<compile_context>
chip_gen: v7x
topology: tpu7x:2x2x1
jax: 0.10.0
libtpu: 0.0.40
codegen_flags: <defaults>
</compile_context>

<pallas_src>
import functools

import jax
import jax.numpy as jnp
from jax.experimental import pallas as pl
from jax.experimental.pallas import tpu as pltpu

_PACK = 32  # row-tile granularity: covers f32 (8), bf16 (16), int8/fp8 (32) sublane packing


def _h_swish_kernel(x_ref, o_ref):
    x = x_ref[...]
    # Upcast to f32 for the arithmetic (free: memory-bound kernel, idle VPU
    # slots; v5e has no bf16 VALU and would upcast anyway), cast back on store
    # so HBM traffic stays in the input dtype.
    xf = x.astype(jnp.float32)
    hsig = jnp.clip(xf + 3.0, 0.0, 6.0) / 6.0  # h_sigmoid, true /6 to match the reference
    o_ref[...] = (xf * hsig).astype(o_ref.dtype)


@functools.lru_cache(maxsize=1)
def _tpu_generation_params():
    """(block_bytes, vmem_limit_bytes, num_tensorcores) tuned per TPU generation.

    Uses device_kind (always present) rather than pltpu.get_tpu_info() field
    names; falls back to conservative v5e-safe settings for unknown parts.
    """
    kind = ""
    try:
        kind = jax.devices()[0].device_kind.lower()
    except Exception:  # e.g. interpret mode / no devices — use safe defaults.
        pass
    if "v7" in kind:
        # ~3.2 TB/s HBM: 8 MiB blocks cut the 0.35 us/step overhead to ~6%.
        # Only 64 MiB physical VMEM -> 4x8=32 MiB live, 48 MiB scoped limit.
        return 8 * 1024 * 1024, 48 * 1024 * 1024, 2
    if "v6" in kind:
        # ~1.35 TB/s HBM, 128 MiB VMEM: 16 MiB blocks, 4x16=64 MiB live.
        return 16 * 1024 * 1024, 80 * 1024 * 1024, 1
    # v5e/v5p/v4/unknown: 4 MiB blocks already hide step overhead; the 32 MiB
    # limit is required on v5e (scoped default 16 MiB < ~16 MiB live).
    return 4 * 1024 * 1024, 32 * 1024 * 1024, 1


def _call_kwargs(donate):
    return {"input_output_aliases": {0: 0}} if donate else {}


def _h_swish_2d(x2d, block_bytes, vmem_limit_bytes, n_tc, donate):
    """Lane-dense 2-D path: width is a multiple of 128 -> unmasked vector stores."""
    rows, width = x2d.shape
    dtype = x2d.dtype
    elem = dtype.itemsize

    # Target ~block_bytes per *input* block; in+out double-buffered is ~4x that
    # live in VMEM, which fits the per-generation scoped limit chosen above.
    tr = max(_PACK, (block_bytes // (width * elem)) // _PACK * _PACK)

    if rows <= tr:
        if n_tc >= 2 and rows > 2 * _PACK:
            # Multi-TC part (v7x): split in two so the "parallel" grid axis can
            # shard across both TensorCores.  On 1-TC chips this would only add
            # a wasted serial grid step, so it is gated on n_tc.
            half = (rows + 1) // 2
            tr = ((half + _PACK - 1) // _PACK) * _PACK
        else:
            tr = rows  # block == full array dim: always a legal block shape
    grid_n = pl.cdiv(rows, tr)  # partial last block is masked by Pallas

    if n_tc >= 2 and grid_n >= 3 and grid_n % 2 == 1:
        # Odd step count on a 2-TC part leaves one core a whole extra step;
        # shrink the row tile slightly so the count comes out even (best effort).
        tr_even = ((pl.cdiv(rows, grid_n + 1) + _PACK - 1) // _PACK) * _PACK
        if _PACK <= tr_even <= tr:
            tr = tr_even
            grid_n = pl.cdiv(rows, tr)

    return pl.pallas_call(
        _h_swish_kernel,
        out_shape=jax.ShapeDtypeStruct((rows, width), dtype),
        grid_spec=pltpu.PrefetchScalarGridSpec(
            num_scalar_prefetch=0,
            grid=(grid_n,),
            in_specs=[pl.BlockSpec((tr, width), lambda i: (i, 0))],
            out_specs=pl.BlockSpec((tr, width), lambda i: (i, 0)),
        ),
        compiler_params=pltpu.CompilerParams(
            dimension_semantics=("parallel",),
            vmem_limit_bytes=vmem_limit_bytes,
        ),
        **_call_kwargs(donate),
    )(x2d)


def _h_swish_1d(x1d, block_bytes, vmem_limit_bytes, donate):
    """Rare misaligned path: flat 1-D blocked call, no pad/copy; Pallas masks the tail block."""
    total = x1d.shape[0]
    elem = x1d.dtype.itemsize

    blk = max(8 * 128, (block_bytes // elem) // (8 * 128) * (8 * 128))  # multiple of 1024 lanes*sublanes
    if blk >= total:
        blk = total  # block == full array dim: always legal
    grid_n = pl.cdiv(total, blk)

    return pl.pallas_call(
        _h_swish_kernel,
        out_shape=jax.ShapeDtypeStruct((total,), x1d.dtype),
        grid_spec=pltpu.PrefetchScalarGridSpec(
            num_scalar_prefetch=0,
            grid=(grid_n,),
            in_specs=[pl.BlockSpec((blk,), lambda i: (i,))],
            out_specs=pl.BlockSpec((blk,), lambda i: (i,)),
        ),
        compiler_params=pltpu.CompilerParams(
            dimension_semantics=("parallel",),
            vmem_limit_bytes=vmem_limit_bytes,
        ),
        **_call_kwargs(donate),
    )(x1d)


def h_swish(x: jax.Array, *, block_bytes: int | None = None,
            vmem_limit_bytes: int | None = None, donate: bool = False) -> jax.Array:
    """Elementwise h_swish over an arbitrary-shape array (NCHW expected).

    `donate=True` adds input_output_aliases={0: 0}; pair it with caller-side
    buffer donation to halve peak HBM footprint for large activations.
    """
    orig_shape = x.shape
    total = x.size
    if total == 0:
        return x

    gen_block, gen_vmem, n_tc = _tpu_generation_params()
    if block_bytes is None:
        block_bytes = gen_block
    if vmem_limit_bytes is None:
        vmem_limit_bytes = gen_vmem

    # Widest lane-dense minor dim that divides the element count -> fully
    # unmasked 128-lane stores and no padding/copies on the common NCHW path.
    width = 0
    for w in (1024, 512, 256, 128):
        if total % w == 0:
            width = w
            break

    if width:
        y2d = _h_swish_2d(x.reshape(total // width, width),
                          block_bytes, vmem_limit_bytes, n_tc, donate)
        return y2d.reshape(orig_shape)

    # Element count not a multiple of 128 (unusual for NCHW activations):
    # flat 1-D blocked kernel, partial last block masked by Pallas — no
    # concatenate/pad/slice copies.
    y1d = _h_swish_1d(x.reshape(-1), block_bytes, vmem_limit_bytes, donate)
    return y1d.reshape(orig_shape)


def _h_swish_ref(x):
    return x * jnp.clip(x + 3.0, 0.0, 6.0) / 6.0


if __name__ == "__main__":
    key = jax.random.PRNGKey(0)

    # 1) NCHW f32 activation (aligned common path: total is a multiple of 128).
    x = jax.random.normal(key, (2, 4, 16, 16), dtype=jnp.float32) * 4.0
    y = jax.block_until_ready(h_swish(x))
    assert y.shape == x.shape and y.dtype == x.dtype
    assert jnp.allclose(y, _h_swish_ref(x), atol=1e-6, rtol=1e-6)

    # 2) Misaligned element count (exercises the copy-free 1-D path).
    x_odd = jax.random.normal(jax.random.PRNGKey(1), (3, 5, 7, 11), dtype=jnp.float32) * 4.0
    y_odd = jax.block_until_ready(h_swish(x_odd))
    assert y_odd.shape == x_odd.shape
    assert jnp.allclose(y_odd, _h_swish_ref(x_odd), atol=1e-6, rtol=1e-6)

    # 3) bf16 in / bf16 out (HBM traffic stays bf16; compute upcast to f32).
    x_bf = (jax.random.normal(jax.random.PRNGKey(2), (2, 8, 16, 16)) * 4.0).astype(jnp.bfloat16)
    y_bf = jax.block_until_ready(h_swish(x_bf))
    assert y_bf.dtype == jnp.bfloat16 and y_bf.shape == x_bf.shape
    assert jnp.allclose(
        y_bf.astype(jnp.float32), _h_swish_ref(x_bf.astype(jnp.float32)),
        atol=0.05, rtol=0.05,
    )

    print("KERNEL_OK")
</pallas_src>

<mosaic_0001>
module attributes {stable_mosaic.version = 11 : i64} {
  func.func @_h_swish_kernel(%arg0: i32, %arg1: memref<2x1024xf32, #tpu.memory_space<vmem>>, %arg2: memref<2x1024xf32, #tpu.memory_space<vmem>>) attributes {dimension_semantics = [#tpu.dimension_semantics<parallel>], iteration_bounds = array<i64: 1>, scalar_prefetch = 0 : i64, scratch_operands = 0 : i64, tpu.core_type = #tpu.core_type<tc>, window_params = [{transform_indices = @transform_0, window_bounds = array<i64: 2, 1024>}, {transform_indices = @transform_1, window_bounds = array<i64: 2, 1024>}]} {
    %c0 = arith.constant 0 : index
    %c0_0 = arith.constant 0 : index
    %0 = vector.load %arg1[%c0, %c0_0] : memref<2x1024xf32, #tpu.memory_space<vmem>>, vector<2x1024xf32>
    %cst = arith.constant 3.000000e+00 : f32
    %1 = vector.broadcast %cst : f32 to vector<2x1024xf32>
    %2 = arith.addf %0, %1 : vector<2x1024xf32>
    %cst_1 = arith.constant 0.000000e+00 : f32
    %cst_2 = arith.constant 6.000000e+00 : f32
    %3 = vector.broadcast %cst_1 : f32 to vector<2x1024xf32>
    %4 = arith.maximumf %3, %2 : vector<2x1024xf32>
    %5 = vector.broadcast %cst_2 : f32 to vector<2x1024xf32>
    %6 = arith.minimumf %5, %4 : vector<2x1024xf32>
    %cst_3 = arith.constant 6.000000e+00 : f32
    %7 = vector.broadcast %cst_3 : f32 to vector<2x1024xf32>
    %8 = arith.divf %6, %7 : vector<2x1024xf32>
    %9 = arith.mulf %0, %8 : vector<2x1024xf32>
    %c0_4 = arith.constant 0 : index
    %c0_5 = arith.constant 0 : index
    %10 = vector.load %arg2[%c0_4, %c0_5] : memref<2x1024xf32, #tpu.memory_space<vmem>>, vector<2x1024xf32>
    tpu.vector_store %arg2[%c0_4, %c0_5], %9 {strides = array<i32>} : memref<2x1024xf32, #tpu.memory_space<vmem>>, vector<2x1024xf32>,
    return
  }
  func.func @transform_0(%arg0: i32) -> (i32, i32) {
    %c0_i32 = arith.constant 0 : i32
    %c0_i32_0 = arith.constant 0 : i32
    return %arg0, %c0_i32 : i32, i32
  }
  func.func @transform_1(%arg0: i32) -> (i32, i32) {
    %c0_i32 = arith.constant 0 : i32
    %c0_i32_0 = arith.constant 0 : i32
    return %arg0, %c0_i32 : i32, i32
  }
}

</mosaic_0001>

<llo_original>
// kernel: tpu_custom_call.1
$region0: #{tpu_custom_call.1}
  #allocation0 [shape = 'u32[]', space=smem, size = 0x4, offset = 0x4, fixed_abs, tag = 'smem constant byte address 0x4 - core index']
  #allocation1 [shape = 'u32[144,128]{1,0:T(1,128)}', space=vmem, size = 0x12000, scoped, tag = 'internal scratch']
  %s0 = inlined_call_operand.hbm [shape: f32[2,1024], index: 0, kind: input, shape index: {}]
  %s1 = inlined_call_operand.hbm [shape: f32[2,1024], index: 1, kind: output, shape index: {}]
  %s2 = sld [smem:[#allocation0]]
  $region18: #{tpu_custom_call.1} parent=0
    _
  %s4 = ssub.s32 1, %s2
  %s5 = scalar_select 0, %s4, %s2
  $region1: #{tpu_custom_call.1} parent=0
    #allocation2 [shape = 'u8[8192]{0}', space=vmem, size = 0x2000, scoped, tag = 'input window, operand 0, single buffered']
    #allocation3 [shape = 's32[1]{0}', space=sflag, size = 0x4, scoped, tag = 'scoped memory for tpu_custom_call.1']
    #allocation4 [shape = 's32[1]{0}', space=sflag, size = 0x4, scoped, tag = 'scoped memory for tpu_custom_call.1']
    #allocation5 [shape = 'u8[8192]{0}', space=vmem, size = 0x2000, scoped, tag = 'output window, operand 0, single buffered']
    %6 = vsyncpa [#allocation3], 0
    %7 = vsyncpa [#allocation4], 0
    // Predicated region
    $region2: #{tpu_custom_call.1} parent=1 // pred_check
      _
    $region3: #{tpu_custom_call.1} parent=1 // pred_check_branch
      %9 = sbr.rel (0) target = $region5
    $region4: #{tpu_custom_call.1} parent=1 // pred_region
      %s11 = ssub.s32 256, 256
      %12 = vsyncadd [#allocation3], %s11
      %s14 = sshll.u32 [#allocation2], 4
      %s15 = int_to_ptr.vmem [resolvable:$true] %s14
      %17 = dma.hbm_to_vmem [thread:$0]  %s0, 256, %s15, [#allocation3]
    $region5: #{tpu_custom_call.1} parent=1 // pred_fallthru
      _
    // Predicated region
    $region6: #{tpu_custom_call.1} parent=1 // pred_check
      _
    $region7: #{tpu_custom_call.1} parent=1 // pred_check_branch
      %19 = sbr.rel (0) target = $region9
    $region8: #{tpu_custom_call.1} parent=1 // pred_region
      %20 = dma.done [#allocation3], 256
    $region9: #{tpu_custom_call.1} parent=1 // pred_fallthru
      _
    %v21 = vld [vmem:[#allocation2] sm:$0xff]
    %v22 = vld [vmem:[#allocation2 + $0x8] sm:$0xff]
    %v23 = vadd.f32 %v21, 3.0
    %v24 = vadd.f32 %v22, 3.0
    %v25 = vmax.f32 %v23, 0.0
    %v26 = vmax.f32 %v24, 0.0
    %v27 = vmin.f32 %v25, 6.0
    %v28 = vmin.f32 %v26, 6.0
    %v29 = vrcp.pop 6.0
    %v30 = vmul.f32 %v27, %v29
    %v31 = vmul.f32 %v28, %v29
    %v32 = vmul.f32 %v21, %v30
    %v33 = vmul.f32 %v22, %v31
    %34 = vst [vmem:[#allocation5] sm:$0xff] %v32
    %35 = vst [vmem:[#allocation5 + $0x8] sm:$0xff] %v33
    // Predicated region
    $region10: #{tpu_custom_call.1} parent=1 // pred_check
      _
    $region11: #{tpu_custom_call.1} parent=1 // pred_check_branch
      %37 = sbr.rel (0) target = $region13
    $region12: #{tpu_custom_call.1} parent=1 // pred_region
      %s39 = ssub.s32 256, 256
      %40 = vsyncadd [#allocation4], %s39
      %s42 = sshll.u32 [#allocation5], 4
      %s43 = int_to_ptr.vmem [resolvable:$true] %s42
      %45 = dma.vmem_to_hbm [thread:$0]  %s43, 256, %s1, [#allocation4]
    $region13: #{tpu_custom_call.1} parent=1 // pred_fallthru
      _
    // Predicated region
    $region14: #{tpu_custom_call.1} parent=1 // pred_check
      _
    $region15: #{tpu_custom_call.1} parent=1 // pred_check_branch
      %47 = sbr.rel (0) target = $region17
    $region16: #{tpu_custom_call.1} parent=1 // pred_region
      %48 = dma.done [#allocation4], 256
    $region17: #{tpu_custom_call.1} parent=1 // pred_fallthru
      _
    %49 = vsyncpa [#allocation3], 1
    %50 = vsyncpa [#allocation4], 1

</llo_original>
